<compile_context>
chip_gen: v7x
topology: tpu7x:2x2x1
jax: 0.10.0
libtpu: 0.0.40
codegen_flags: <defaults>
</compile_context>

<pallas_src>
import functools

import jax
import jax.numpy as jnp
from jax import lax
from jax.experimental import pallas as pl
from jax.experimental.pallas import tpu as pltpu


def _round_up(x, m):
    return (x + m - 1) // m * m


def _proxynca_kernel(emb_ref, prox_ref, labels_ref, out_ref, *,
                     num_classes, tile_c, scale, coeff_all, coeff_diag,
                     dot_dtype, needs_row_mask):
    t = pl.program_id(0)

    x = emb_ref[...].astype(jnp.float32)      # (B,  Dp)
    p = prox_ref[...].astype(jnp.float32)     # (TC, Dp)
    lbl = labels_ref[...]                     # (TC, 1) int32

    batch = x.shape[0]
    eps2 = jnp.float32(1e-24)                 # F.normalize eps (1e-12), squared

    # Row-normalize on the EUP (rsqrt) instead of sqrt + max + divide.
    p_n = p * lax.rsqrt(jnp.sum(p * p, axis=1, keepdims=True) + eps2)
    # Fold the static logit scale (2 * scaling_p * scaling_x) into the (B, 1)
    # normalization factor of x — cheapest place to apply it.
    x_n = x * (lax.rsqrt(jnp.sum(x * x, axis=1, keepdims=True) + eps2)
               * jnp.float32(scale))

    # MXU: (TC, Dp) contracted with (B, Dp) on the feature axis -> (TC, B).
    logits = lax.dot_general(p_n.astype(dot_dtype), x_n.astype(dot_dtype),
                             (((1,), (1,)), ((), ())),
                             preferred_element_type=jnp.float32)

    # log_softmax over the batch axis (== dim=1 of the (C, B) distance matrix).
    m = jnp.max(logits, axis=1, keepdims=True)
    lse = m + jnp.log(jnp.sum(jnp.exp(logits - m), axis=1, keepdims=True))
    lsm = logits - lse                                            # (TC, B)

    # Lane-axis partial reductions per row of this tile.
    col = lax.broadcasted_iota(jnp.int32, (tile_c, batch), 1)
    diag = col == lbl                                             # (TC, B)
    row_all = jnp.sum(lsm, axis=1, keepdims=True)                 # (TC, 1)
    row_diag = jnp.sum(jnp.where(diag, lsm, jnp.float32(0.0)),
                       axis=1, keepdims=True)                     # (TC, 1)

    if needs_row_mask:  # mask out zero-padded proxy/sample rows (last tile)
        row = lax.broadcasted_iota(jnp.int32, (tile_c, 1), 0) + t * tile_c
        keep = row < num_classes
        row_all = jnp.where(keep, row_all, jnp.float32(0.0))
        row_diag = jnp.where(keep, row_diag, jnp.float32(0.0))

    partial = (jnp.float32(coeff_all) * jnp.sum(row_all)
               + jnp.float32(coeff_diag) * jnp.sum(row_diag))

    # Resident SMEM scalar accumulator across the (reduction) grid axis.
    @pl.when(t == 0)
    def _():
        out_ref[0] = jnp.float32(0.0)

    out_ref[0] += partial


def proxy_nca_loss(embeddings, labels, proxies, *,
                   label_smoothing, scaling_x, scaling_p, tile_c=256):
    B, D = embeddings.shape
    C, D2 = proxies.shape
    assert D == D2
    # The reference's (B, C) * (C, B) elementwise product only broadcasts when
    # B == C; we reproduce the literal behavior.
    assert B == C, "literal reference broadcasting requires batch == num_classes"
    assert C > 1, "reference divides by (num_classes - 1)"

    # Lane-align the feature axis; sublane-align / tile the proxy-class axis.
    d_pad = _round_up(D, 128)
    c8 = _round_up(C, 8)
    tc = min(c8, int(tile_c))
    c_pad = _round_up(c8, tc)
    n_tiles = c_pad // tc

    emb = embeddings
    prox = proxies
    if d_pad != D:
        emb = jnp.pad(emb, ((0, 0), (0, d_pad - D)))
        prox = jnp.pad(prox, ((0, 0), (0, d_pad - D)))
    if c_pad != C:
        prox = jnp.pad(prox, ((0, c_pad - C), (0, 0)))

    lbl = labels.astype(jnp.int32).reshape(B, 1)
    if c_pad != B:
        lbl = jnp.pad(lbl, ((0, c_pad - B), (0, 0)))

    # Static label-smoothing coefficients (literal reference construction:
    # entries that are exactly zero after *(1-ls) become ls/(C-1)).
    ls = float(label_smoothing)
    off = ls / float(C - 1)
    diag_val = (1.0 - ls) if (1.0 - ls) != 0.0 else off
    inv_b = 1.0 / float(B)
    coeff_all = -off * inv_b
    coeff_diag = -(diag_val - off) * inv_b

    use_bf16 = (embeddings.dtype == jnp.bfloat16
                and proxies.dtype == jnp.bfloat16)

    kernel = functools.partial(
        _proxynca_kernel,
        num_classes=C,
        tile_c=tc,
        scale=2.0 * float(scaling_x) * float(scaling_p),
        coeff_all=coeff_all,
        coeff_diag=coeff_diag,
        dot_dtype=jnp.bfloat16 if use_bf16 else jnp.float32,
        needs_row_mask=(c_pad != C),
    )

    out = pl.pallas_call(
        kernel,
        out_shape=jax.ShapeDtypeStruct((1,), jnp.float32),
        grid=(n_tiles,),
        in_specs=[
            # embeddings: full (B, Dp) block, constant index -> resident.
            pl.BlockSpec((B, d_pad), lambda t: (0, 0)),
            # proxies: one (TC, Dp) tile per grid step.
            pl.BlockSpec((tc, d_pad), lambda t: (t, 0)),
            # labels of the samples matching this proxy tile (B == C).
            pl.BlockSpec((tc, 1), lambda t: (t, 0)),
        ],
        # Scalar loss accumulator lives in SMEM, resident across the grid.
        out_specs=pl.BlockSpec(memory_space=pltpu.MemorySpace.SMEM),
        compiler_params=pltpu.CompilerParams(
            dimension_semantics=("arbitrary",),  # reduction over proxy tiles
            vmem_limit_bytes=64 * 1024 * 1024,
        ),
    )(emb, prox, lbl)
    return out[0]


if __name__ == "__main__":
    key = jax.random.PRNGKey(0)
    k_prox, k_emb, k_lbl = jax.random.split(key, 3)

    # Small shapes: batch == num_classes == 8 (required by the reference's
    # literal broadcasting), in_features == 32.
    B = 8
    C = 8
    D = 32
    label_smoothing = 0.1
    scaling_x = 1.0
    scaling_p = 8.0

    # nn.Parameter(torch.randn(num_classes, in_features) / 8)
    proxies = jax.random.normal(k_prox, (C, D), dtype=jnp.float32) / 8.0
    embeddings = jax.random.normal(k_emb, (B, D), dtype=jnp.float32)
    labels = jax.random.randint(k_lbl, (B,), 0, C, dtype=jnp.int32)

    loss = proxy_nca_loss(embeddings, labels, proxies,
                          label_smoothing=label_smoothing,
                          scaling_x=scaling_x,
                          scaling_p=scaling_p)
    jax.block_until_ready(loss)
    print("KERNEL_OK")
</pallas_src>

<mosaic_0001>
module attributes {stable_mosaic.version = 11 : i64} {
  func.func @_proxynca_kernel(%arg0: i32, %arg1: memref<8x128xf32, #tpu.memory_space<vmem>>, %arg2: memref<8x128xf32, #tpu.memory_space<vmem>>, %arg3: memref<8x1xi32, #tpu.memory_space<vmem>>, %arg4: memref<1xf32, #tpu.memory_space<smem>>) attributes {dimension_semantics = [#tpu.dimension_semantics<arbitrary>], iteration_bounds = array<i64: 1>, scalar_prefetch = 0 : i64, scratch_operands = 0 : i64, tpu.core_type = #tpu.core_type<tc>, window_params = [{pipeline_mode = #tpu.pipeline_mode<synchronous>, transform_indices = @transform_0, window_bounds = array<i64: 8, 128>}, {transform_indices = @transform_1, window_bounds = array<i64: 8, 128>}, {transform_indices = @transform_2, window_bounds = array<i64: 8, 1>}, {transform_indices = @transform_3, window_bounds = array<i64: 1>}]} {
    %c0 = arith.constant 0 : index
    %c0_0 = arith.constant 0 : index
    %0 = vector.load %arg1[%c0, %c0_0] : memref<8x128xf32, #tpu.memory_space<vmem>>, vector<8x128xf32>
    %c0_1 = arith.constant 0 : index
    %c0_2 = arith.constant 0 : index
    %1 = vector.load %arg2[%c0_1, %c0_2] : memref<8x128xf32, #tpu.memory_space<vmem>>, vector<8x128xf32>
    %c0_3 = arith.constant 0 : index
    %c0_4 = arith.constant 0 : index
    %2 = vector.load %arg3[%c0_3, %c0_4] : memref<8x1xi32, #tpu.memory_space<vmem>>, vector<8x1xi32>
    %3 = arith.mulf %1, %1 : vector<8x128xf32>
    %cst = arith.constant dense<0.000000e+00> : vector<8xf32>
    %4 = vector.multi_reduction <add>, %3, %cst [1] : vector<8x128xf32> to vector<8xf32>
    %5 = vector.shape_cast %4 : vector<8xf32> to vector<8x1xf32>
    %cst_5 = arith.constant 1.000000e-24 : f32
    %6 = vector.broadcast %cst_5 : f32 to vector<8x1xf32>
    %7 = arith.addf %5, %6 : vector<8x1xf32>
    %8 = math.rsqrt %7 : vector<8x1xf32>
    %9 = vector.broadcast %8 : vector<8x1xf32> to vector<8x128xf32>
    %10 = arith.mulf %1, %9 : vector<8x128xf32>
    %11 = arith.mulf %0, %0 : vector<8x128xf32>
    %cst_6 = arith.constant dense<0.000000e+00> : vector<8xf32>
    %12 = vector.multi_reduction <add>, %11, %cst_6 [1] : vector<8x128xf32> to vector<8xf32>
    %13 = vector.shape_cast %12 : vector<8xf32> to vector<8x1xf32>
    %cst_7 = arith.constant 1.000000e-24 : f32
    %14 = vector.broadcast %cst_7 : f32 to vector<8x1xf32>
    %15 = arith.addf %13, %14 : vector<8x1xf32>
    %16 = math.rsqrt %15 : vector<8x1xf32>
    %cst_8 = arith.constant 1.600000e+01 : f32
    %17 = vector.broadcast %cst_8 : f32 to vector<8x1xf32>
    %18 = arith.mulf %16, %17 : vector<8x1xf32>
    %19 = vector.broadcast %18 : vector<8x1xf32> to vector<8x128xf32>
    %20 = arith.mulf %0, %19 : vector<8x128xf32>
    %cst_9 = arith.constant dense<0.000000e+00> : vector<8x8xf32>
    %21 = tpu.matmul %10, %20, %cst_9 {dimension_numbers = #tpu.dot_dimension_numbers<[1], [1], [0], [0], [0, 0, 1, 0], [], []>} : vector<8x128xf32>, vector<8x128xf32>, vector<8x8xf32> -> vector<8x8xf32>
    %cst_10 = arith.constant dense<0xFF800000> : vector<8xf32>
    %22 = vector.multi_reduction <maximumf>, %21, %cst_10 [1] : vector<8x8xf32> to vector<8xf32>
    %23 = vector.shape_cast %22 : vector<8xf32> to vector<8x1xf32>
    %24 = vector.broadcast %23 : vector<8x1xf32> to vector<8x8xf32>
    %25 = arith.subf %21, %24 : vector<8x8xf32>
    %26 = math.exp %25 : vector<8x8xf32>
    %cst_11 = arith.constant dense<0.000000e+00> : vector<8xf32>
    %27 = vector.multi_reduction <add>, %26, %cst_11 [1] : vector<8x8xf32> to vector<8xf32>
    %28 = vector.shape_cast %27 : vector<8xf32> to vector<8x1xf32>
    %29 = math.log %28 : vector<8x1xf32>
    %30 = arith.addf %23, %29 : vector<8x1xf32>
    %31 = vector.broadcast %30 : vector<8x1xf32> to vector<8x8xf32>
    %32 = arith.subf %21, %31 : vector<8x8xf32>
    %33 = tpu.iota {dimensions = array<i32: 1>} : vector<8x8xi32>
    %34 = vector.broadcast %2 : vector<8x1xi32> to vector<8x8xi32>
    %35 = arith.cmpi eq, %33, %34 : vector<8x8xi32>
    %cst_12 = arith.constant dense<0.000000e+00> : vector<8xf32>
    %36 = vector.multi_reduction <add>, %32, %cst_12 [1] : vector<8x8xf32> to vector<8xf32>
    %37 = vector.shape_cast %36 : vector<8xf32> to vector<8x1xf32>
    %cst_13 = arith.constant 0.000000e+00 : f32
    %38 = vector.broadcast %cst_13 : f32 to vector<8x8xf32>
    %39 = arith.select %35, %32, %38 : vector<8x8xi1>, vector<8x8xf32>
    %cst_14 = arith.constant dense<0.000000e+00> : vector<8xf32>
    %40 = vector.multi_reduction <add>, %39, %cst_14 [1] : vector<8x8xf32> to vector<8xf32>
    %41 = vector.shape_cast %40 : vector<8xf32> to vector<8x1xf32>
    %42 = vector.shape_cast %37 : vector<8x1xf32> to vector<1x8x1xf32>
    %cst_15 = arith.constant dense<0.000000e+00> : vector<1xf32>
    %43 = vector.multi_reduction <add>, %42, %cst_15 [1, 2] : vector<1x8x1xf32> to vector<1xf32>
    %44 = vector.shape_cast %43 : vector<1xf32> to vector<1x1x1xf32>
    %45 = vector.extract %44[0, 0, 0] : f32 from vector<1x1x1xf32>
    %cst_16 = arith.constant -0.0017857143 : f32
    %46 = arith.mulf %cst_16, %45 : f32
    %47 = vector.shape_cast %41 : vector<8x1xf32> to vector<1x8x1xf32>
    %cst_17 = arith.constant dense<0.000000e+00> : vector<1xf32>
    %48 = vector.multi_reduction <add>, %47, %cst_17 [1, 2] : vector<1x8x1xf32> to vector<1xf32>
    %49 = vector.shape_cast %48 : vector<1xf32> to vector<1x1x1xf32>
    %50 = vector.extract %49[0, 0, 0] : f32 from vector<1x1x1xf32>
    %cst_18 = arith.constant -0.110714287 : f32
    %51 = arith.mulf %cst_18, %50 : f32
    %52 = arith.addf %46, %51 : f32
    %c0_i32 = arith.constant 0 : i32
    %53 = arith.cmpi eq, %arg0, %c0_i32 : i32
    %54 = arith.extui %53 : i1 to i32
    %c0_i32_19 = arith.constant 0 : i32
    %55 = arith.cmpi ne, %54, %c0_i32_19 : i32
    scf.if %55 {
      %cst_22 = arith.constant 0.000000e+00 : f32
      %c0_23 = arith.constant 0 : index
      %59 = memref.load %arg4[%c0_23] : memref<1xf32, #tpu.memory_space<smem>>
      memref.store %cst_22, %arg4[%c0_23] : memref<1xf32, #tpu.memory_space<smem>>
    } else {
    }
    %c0_20 = arith.constant 0 : index
    %56 = memref.load %arg4[%c0_20] : memref<1xf32, #tpu.memory_space<smem>>
    %57 = arith.addf %56, %52 : f32
    %c0_21 = arith.constant 0 : index
    %58 = memref.load %arg4[%c0_21] : memref<1xf32, #tpu.memory_space<smem>>
    memref.store %57, %arg4[%c0_21] : memref<1xf32, #tpu.memory_space<smem>>
    return
  }
  func.func @transform_0(%arg0: i32) -> (i32, i32) {
    %c0_i32 = arith.constant 0 : i32
    %c0_i32_0 = arith.constant 0 : i32
    %c0_i32_1 = arith.constant 0 : i32
    return %c0_i32, %c0_i32_0 : i32, i32
  }
  func.func @transform_1(%arg0: i32) -> (i32, i32) {
    %c0_i32 = arith.constant 0 : i32
    %c0_i32_0 = arith.constant 0 : i32
    return %arg0, %c0_i32 : i32, i32
  }
  func.func @transform_2(%arg0: i32) -> (i32, i32) {
    %c0_i32 = arith.constant 0 : i32
    %c0_i32_0 = arith.constant 0 : i32
    return %arg0, %c0_i32 : i32, i32
  }
  func.func @transform_3(%arg0: i32) -> i32 {
    %c0_i32 = arith.constant 0 : i32
    %c0_i32_0 = arith.constant 0 : i32
    return %c0_i32 : i32
  }
}

</mosaic_0001>

<llo_original>
// kernel: tpu_custom_call.1
$region0: #{tpu_custom_call.1}
  #allocation0 [shape = 'u32[]', space=smem, size = 0x4, offset = 0x4, fixed_abs, tag = 'smem constant byte address 0x4 - core index']
  #allocation1 [shape = 'u32[144,128]{1,0:T(1,128)}', space=vmem, size = 0x12000, scoped, tag = 'internal scratch']
  %s0 = inlined_call_operand.hbm [shape: f32[8,128], index: 0, kind: input, shape index: {}]
  %s1 = inlined_call_operand.hbm [shape: f32[8,128], index: 1, kind: input, shape index: {}]
  %s2 = inlined_call_operand.hbm [shape: s32[8,1], index: 2, kind: input, shape index: {}]
  %s3 = inlined_call_operand.hbm [shape: f32[1], index: 3, kind: output, shape index: {}]
  %s4 = sld [smem:[#allocation0]]
  $region38: #{tpu_custom_call.1} parent=0
    _
  %s6 = ssub.s32 1, %s4
  %s7 = scalar_select 0, %s6, %s4
  $region1: #{tpu_custom_call.1} parent=0
    #allocation2 [shape = 'u8[4096]{0}', space=vmem, size = 0x1000, scoped, tag = 'input window, operand 0, single buffered']
    #allocation3 [shape = 's32[1]{0}', space=sflag, size = 0x4, scoped, tag = 'scoped memory for tpu_custom_call.1']
    #allocation4 [shape = 's32[1]{0}', space=sflag, size = 0x4, scoped, tag = 'scoped memory for tpu_custom_call.1']
    #allocation5 [shape = 'u8[4096]{0}', space=vmem, size = 0x1000, scoped, tag = 'input window, operand 1, single buffered']
    #allocation6 [shape = 's32[1]{0}', space=sflag, size = 0x4, scoped, tag = 'scoped memory for tpu_custom_call.1']
    #allocation7 [shape = 'u8[4096]{0}', space=vmem, size = 0x1000, scoped, tag = 'input window, operand 2, single buffered']
    #allocation8 [shape = 'u8[512]{0}', space=smem, size = 0x200, scoped, tag = 'output window, operand 0, single buffered']
    %8 = vsyncpa [#allocation3], 0
    %9 = vsyncpa [#allocation6], 0
    %10 = vsyncpa [#allocation4], 0
    // Predicated region
    $region2: #{tpu_custom_call.1} parent=1 // pred_check
      _
    $region3: #{tpu_custom_call.1} parent=1 // pred_check_branch
      %12 = sbr.rel (0) target = $region5
    $region4: #{tpu_custom_call.1} parent=1 // pred_region
      %s14 = ssub.s32 128, 128
      %15 = vsyncadd [#allocation3], %s14
      %s17 = sshll.u32 [#allocation2], 4
      %s18 = int_to_ptr.vmem [resolvable:$true] %s17
      %20 = dma.hbm_to_vmem [thread:$0]  %s0, 128, %s18, [#allocation3]
    $region5: #{tpu_custom_call.1} parent=1 // pred_fallthru
      _
    // Predicated region
    $region6: #{tpu_custom_call.1} parent=1 // pred_check
      _
    $region7: #{tpu_custom_call.1} parent=1 // pred_check_branch
      %22 = sbr.rel (0) target = $region9
    $region8: #{tpu_custom_call.1} parent=1 // pred_region
      %s24 = ssub.s32 128, 128
      %25 = vsyncadd [#allocation6], %s24
      %s27 = sshll.u32 [#allocation5], 4
      %s28 = int_to_ptr.vmem [resolvable:$true] %s27
      %30 = dma.hbm_to_vmem [thread:$0]  %s1, 128, %s28, [#allocation6]
    $region9: #{tpu_custom_call.1} parent=1 // pred_fallthru
      _
    // Predicated region
    $region10: #{tpu_custom_call.1} parent=1 // pred_check
      _
    $region11: #{tpu_custom_call.1} parent=1 // pred_check_branch
      %32 = sbr.rel (0) target = $region13
    $region12: #{tpu_custom_call.1} parent=1 // pred_region
      %s34 = ssub.s32 128, 128
      %35 = vsyncadd [#allocation6], %s34
      %s37 = sshll.u32 [#allocation7], 4
      %s38 = int_to_ptr.vmem [resolvable:$true] %s37
      %40 = dma.hbm_to_vmem [thread:$0]  %s2, 128, %s38, [#allocation6]
    $region13: #{tpu_custom_call.1} parent=1 // pred_fallthru
      _
    // Predicated region
    $region14: #{tpu_custom_call.1} parent=1 // pred_check
      _
    $region15: #{tpu_custom_call.1} parent=1 // pred_check_branch
      %42 = sbr.rel (0) target = $region17
    $region16: #{tpu_custom_call.1} parent=1 // pred_region
      %43 = dma.done [#allocation3], 128
    $region17: #{tpu_custom_call.1} parent=1 // pred_fallthru
      _
    // Predicated region
    $region18: #{tpu_custom_call.1} parent=1 // pred_check
      _
    $region19: #{tpu_custom_call.1} parent=1 // pred_check_branch
      %45 = sbr.rel (0) target = $region21
    $region20: #{tpu_custom_call.1} parent=1 // pred_region
      %46 = dma.done [#allocation6], 128
    $region21: #{tpu_custom_call.1} parent=1 // pred_fallthru
      _
    // Predicated region
    $region22: #{tpu_custom_call.1} parent=1 // pred_check
      _
    $region23: #{tpu_custom_call.1} parent=1 // pred_check_branch
      %48 = sbr.rel (0) target = $region25
    $region24: #{tpu_custom_call.1} parent=1 // pred_region
      %49 = dma.done [#allocation6], 128
    $region25: #{tpu_custom_call.1} parent=1 // pred_fallthru
      _
    %v50 = vld [vmem:[#allocation2] sm:$0xff]
    %v51 = vld [vmem:[#allocation5] sm:$0xff]
    %v52 = vld [vmem:[#allocation7] sm:$0xff]
    %v53 = vmul.f32 %v51, %v51
    %54 = vadd.xlane.f32.xlu0 %v53
    %v55 = vpop.xlane.xlu0 %54
    %v56 = vadd.f32 %v55, 1e-24
    %v57 = vrsqrt.pop %v56
    %v58 = vmul.f32 %v51, %v57
    %v59 = vmul.f32 %v50, %v50
    %60 = vadd.xlane.f32.xlu0 %v59
    %v61 = vpop.xlane.xlu0 %60
    %v62 = vadd.f32 %v61, 1e-24
    %v63 = vrsqrt.pop %v62
    %v64 = vmul.f32 %v63, 16.0
    %v65 = vmul.f32 %v50, %v64
    %66 = vmatprep.subr.mxu0 0.0
    %67 = vmatpush1.xpose.msra.mxu0 %v65
    %68 = vmatprep.subr.mxu0 0.0
    %69 = vmatpush1.xpose.msra.mxu0 0.0
    %70 = vmatprep.subr.mxu0 0.0
    %71 = vmatpush1.xpose.msra.mxu0 0.0
    %72 = vmatprep.subr.mxu0 0.0
    %73 = vmatpush1.xpose.msra.mxu0 0.0
    %74 = vmatprep.subr.mxu0 0.0
    %75 = vmatpush1.xpose.msra.mxu0 0.0
    %76 = vmatprep.subr.mxu0 0.0
    %77 = vmatpush1.xpose.msra.mxu0 0.0
    %78 = vmatprep.subr.mxu0 0.0
    %79 = vmatpush1.xpose.msra.mxu0 0.0
    %80 = vmatprep.subr.mxu0 0.0
    %81 = vmatpush1.xpose.msra.mxu0 0.0
    %82 = vmatprep.subr.mxu0 0.0
    %83 = vmatpush1.xpose.msra.mxu0 0.0
    %84 = vmatprep.subr.mxu0 0.0
    %85 = vmatpush1.xpose.msra.mxu0 0.0
    %86 = vmatprep.subr.mxu0 0.0
    %87 = vmatpush1.xpose.msra.mxu0 0.0
    %88 = vmatprep.subr.mxu0 0.0
    %89 = vmatpush1.xpose.msra.mxu0 0.0
    %90 = vmatprep.subr.mxu0 0.0
    %91 = vmatpush1.xpose.msra.mxu0 0.0
    %92 = vmatprep.subr.mxu0 0.0
    %93 = vmatpush1.xpose.msra.mxu0 0.0
    %94 = vmatprep.subr.mxu0 0.0
    %95 = vmatpush1.xpose.msra.mxu0 0.0
    %96 = vmatprep.subr.mxu0 0.0
    %97 = vmatpush1.xpose.msra.mxu0 0.0
    %98 = vmatprep.subr.mxu0 0.0
    %99 = vmatpush1.xpose.msra.mxu0 0.0
    %100 = vmatprep.subr.mxu0 0.0
    %101 = vmatpush1.xpose.msra.mxu0 0.0
    %102 = vmatprep.subr.mxu0 0.0
    %103 = vmatpush1.xpose.msra.mxu0 0.0
    %104 = vmatprep.subr.mxu0 0.0
    %105 = vmatpush1.xpose.msra.mxu0 0.0
    %106 = vmatprep.subr.mxu0 0.0
    %107 = vmatpush1.xpose.msra.mxu0 0.0
    %108 = vmatprep.subr.mxu0 0.0
    %109 = vmatpush1.xpose.msra.mxu0 0.0
    %110 = vmatprep.subr.mxu0 0.0
    %111 = vmatpush1.xpose.msra.mxu0 0.0
    %112 = vmatprep.subr.mxu0 0.0
    %113 = vmatpush1.xpose.msra.mxu0 0.0
    %114 = vmatprep.subr.mxu0 0.0
    %115 = vmatpush1.xpose.msra.mxu0 0.0
    %116 = vmatprep.subr.mxu0 0.0
    %117 = vmatpush1.xpose.msra.mxu0 0.0
    %118 = vmatprep.subr.mxu0 0.0
    %119 = vmatpush1.xpose.msra.mxu0 0.0
    %120 = vmatprep.subr.mxu0 0.0
    %121 = vmatpush1.xpose.msra.mxu0 0.0
    %122 = vmatprep.subr.mxu0 0.0
    %123 = vmatpush1.xpose.msra.mxu0 0.0
    %124 = vmatprep.subr.mxu0 0.0
    %125 = vmatpush1.xpose.msra.mxu0 0.0
    %126 = vmatprep.subr.mxu0 0.0
    %127 = vmatpush1.xpose.msra.mxu0 0.0
    %128 = vmatprep.subr.mxu0 0.0
    %129 = vmatpush1.xpose.msra.mxu0 0.0
    %130 = vmatprep.mubr.f32.mxu0 0.0
    %131 = vmatmul.mubr.f32.gmra.mrb[0].mxu0 %v58
    %v132 = vpop.f32.mrb[0].mxu0
    %v133 = vadd.f32 0.0, %v132
    %v134 = vpop.f32.mrb[0].mxu0
    %135 = vdwg.mxu0
    %vm136 = vcmask 64512
    %v137 = vsel %vm136, %v133, -inf
    %138 = vmax.xlane.f32.xlu0 %v137
    %v139 = vpop.xlane.xlu0 %138
    %v140 = vsub.f32 %v133, %v139
    %v141 = vmul.f32 %v140, 1.442695
    %v142 = vpow.pop %v141
    %v143 = vsel %vm136, %v142, 0.0
    %144 = vadd.xlane.f32.xlu0 %v143
    %v145 = vpop.xlane.xlu0 %144
    %v146 = vlog2.pop %v145
    %v147 = vmul.f32 %v146, 0.6931472
    %v148 = vadd.f32 %v139, %v147
    %v149 = vsub.f32 %v133, %v148
    %v150 = vlaneseq
    %v151 = vand.u32 %v150, 127
    %152 = vset.pattern.permute.xlu0 0
    %153 = vperm.xlu0 %152, %v52
    %v154 = vpop.permute.xlu0 %153
    %vm155 = vcmp.eq.s32.totalorder %v151, %v154
    %v156 = vsel %vm136, %v149, 0.0
    %157 = vadd.xlane.f32.xlu0 %v156
    %v158 = vpop.xlane.xlu0 %157
    %v159 = vsel %vm155, %v149, 0.0
    %v160 = vsel %vm136, %v159, 0.0
    %161 = vadd.xlane.f32.xlu0 %v160
    %v162 = vpop.xlane.xlu0 %161
    %vm163 = vcmask 7168
    %v164 = vsel %vm163, %v158, 0.0
    %165 = vadd.xlane.f32.xlu0 %v164
    %v166 = vpop.xlane.xlu0 %165
    %v167 = vrot.slane %v166, 4
    %v168 = vadd.f32 %v166, %v167
    %v169 = vrot.slane %v168, 2
    %v170 = vadd.f32 %v168, %v169
    %v171 = vrot.slane %v170, 1
    %v172 = vadd.f32 %v170, %v171
    %s173 = vtos %v172
    %s174 = smul.f32 %s173, -0.0017857143
    %v175 = vsel %vm163, %v162, 0.0
    %176 = vadd.xlane.f32.xlu0 %v175
    %v177 = vpop.xlane.xlu0 %176
    %v178 = vrot.slane %v177, 4
    %v179 = vadd.f32 %v177, %v178
    %v180 = vrot.slane %v179, 2
    %v181 = vadd.f32 %v179, %v180
    %v182 = vrot.slane %v181, 1
    %v183 = vadd.f32 %v181, %v182
    %s184 = vtos %v183
    %s185 = smul.f32 %s184, -0.11071429
    %s186 = sadd.f32 %s174, %s185
    %p187 = scmp.eq.s32.totalorder 0, 0
    // Predicated region
    $region26: #{tpu_custom_call.1} parent=1 // pred_check
      %p188 = pneg %p187
    $region27: #{tpu_custom_call.1} parent=1 // pred_check_branch
      %190 = sbr.rel (%p188) target = $region29
    $region28: #{tpu_custom_call.1} parent=1 // pred_region
      %s191 = scalar_lea.smem [#allocation8], 0
      %192 = sst [smem:[%s191]] 0.0
    $region29: #{tpu_custom_call.1} parent=1 // pred_fallthru
      _
    %s193 = sld [smem:[#allocation8]]
    %s194 = sadd.f32 %s193, %s186
    %s195 = scalar_lea.smem [#allocation8], 0
    %196 = sst [smem:[%s195]] %s194
    // Predicated region
    $region30: #{tpu_custom_call.1} parent=1 // pred_check
      _
    $region31: #{tpu_custom_call.1} parent=1 // pred_check_branch
      %198 = sbr.rel (0) target = $region33
    $region32: #{tpu_custom_call.1} parent=1 // pred_region
      %s200 = ssub.s32 16, 16
      %201 = vsyncadd [#allocation4], %s200
      %204 = dma.smem_to_hbm [#allocation8], 16, %s3, [#allocation4]
    $region33: #{tpu_custom_call.1} parent=1 // pred_fallthru
      _
    // Predicated region
    $region34: #{tpu_custom_call.1} parent=1 // pred_check
      _
    $region35: #{tpu_custom_call.1} parent=1 // pred_check_branch
      %206 = sbr.rel (0) target = $region37
    $region36: #{tpu_custom_call.1} parent=1 // pred_region
      %207 = dma.done [#allocation4], 16
    $region37: #{tpu_custom_call.1} parent=1 // pred_fallthru
      _
    %208 = sfence
    %209 = vsyncpa [#allocation3], 1
    %210 = vsyncpa [#allocation6], 1
    %211 = vsyncpa [#allocation4], 1

</llo_original>
